<compile_context>
chip_gen: v6e
topology: v6e:2x2x1
jax: 0.10.0
libtpu: 0.0.40
codegen_flags: <defaults>
</compile_context>

<pallas_src>
import math
from functools import partial

import jax
import jax.numpy as jnp
from jax import lax
from jax.experimental import pallas as pl
from jax.experimental.pallas import tpu as pltpu

_VMEM_LIMIT = 32 * 1024 * 1024


# ----------------------------- tiling helper -----------------------------

def _tile(dim, pref):
    """Largest 128-multiple tile <= pref that evenly divides dim, else the full dim."""
    if dim <= pref:
        return dim
    t = (pref // 128) * 128
    while t >= 128:
        if dim % t == 0:
            return t
        t -= 128
    return dim


# ----------------------------- Pallas kernels -----------------------------

def _embed_pe_kernel(emb_ref, pe_ref, o_ref, *, scale):
    # emb block: (S, D) f32; pe block: (S, D) shared across the batch grid axis
    o_ref[...] = (emb_ref[...] * scale + pe_ref[...]).astype(o_ref.dtype)


def _matmul_bias_kernel(x_ref, w_ref, b_ref, o_ref, acc_ref):
    # tiled matmul with K-axis accumulation: x (tm, tk) bf16/f32, w (tk, tn) bf16, b (1, tn) f32
    k = pl.program_id(2)

    @pl.when(k == 0)
    def _():
        acc_ref[...] = jnp.zeros_like(acc_ref)

    acc_ref[...] += jnp.dot(x_ref[...].astype(jnp.bfloat16), w_ref[...],
                            preferred_element_type=jnp.float32)

    @pl.when(k == pl.num_programs(2) - 1)
    def _():
        o_ref[...] = (acc_ref[...] + b_ref[...]).astype(o_ref.dtype)


def _attn_kernel(q_ref, kv_ref, mask_ref, o_ref, m_sc, l_sc, acc_sc, *,
                 num_heads, head_dim, scale, q_off, k_off, v_off):
    # Online-softmax (flash-style) attention, gridded over (batch, Sq tiles, Sk tiles).
    # Heads live in packed columns; split/merge is static column slicing inside the kernel.
    # m/l scratch is lane-replicated (H, tq, 128) so every scratch store is lane-dense.
    kv = pl.program_id(2)
    tq = acc_sc.shape[0]

    @pl.when(kv == 0)
    def _():
        m_sc[...] = jnp.full(m_sc.shape, -jnp.inf, jnp.float32)
        l_sc[...] = jnp.zeros(l_sc.shape, jnp.float32)
        acc_sc[...] = jnp.zeros(acc_sc.shape, jnp.float32)

    qp = q_ref[0]        # (tq, Wq)  bf16
    kvp = kv_ref[0]      # (tk, Wkv) bf16
    mask = mask_ref[0]   # (mq, tk)  f32; broadcasts over query rows (1 = attend)

    # TODO(synk): move heads onto a grid axis when head_dim == 128 and H is large.
    for h in range(num_heads):
        d0 = h * head_dim
        qh = qp[:, q_off + d0:q_off + d0 + head_dim]
        kh = kvp[:, k_off + d0:k_off + d0 + head_dim]
        vh = kvp[:, v_off + d0:v_off + d0 + head_dim]

        # NT contraction on the MXU (contract head_dim of both operands) — no XLU transpose.
        s = lax.dot_general(qh, kh, (((1,), (1,)), ((), ())),
                            preferred_element_type=jnp.float32) * scale        # (tq, tk)
        s = jnp.where(mask == 0.0, jnp.float32(-1e9), s)

        m_prev = m_sc[h]                                                        # (tq, 128)
        l_prev = l_sc[h]                                                        # (tq, 128)
        m_new = jnp.maximum(m_prev, jnp.max(s, axis=-1, keepdims=True))         # (tq, 128)
        alpha = jnp.exp(m_prev - m_new)                                         # (tq, 128)
        p = jnp.exp(s - m_new[:, :1])                                           # (tq, tk)
        l_sc[h] = alpha * l_prev + jnp.sum(p, axis=-1, keepdims=True)           # lane-dense
        m_sc[h] = m_new                                                         # lane-dense
        acc_sc[:, d0:d0 + head_dim] = (
            alpha[:, :1] * acc_sc[:, d0:d0 + head_dim]
            + jnp.dot(p.astype(jnp.bfloat16), vh, preferred_element_type=jnp.float32))

    @pl.when(kv == pl.num_programs(2) - 1)
    def _():
        # single lane-dense (tq, d_model) output store
        l_full = jnp.concatenate(
            [jnp.broadcast_to(l_sc[h][:, :1], (tq, head_dim)) for h in range(num_heads)],
            axis=-1)
        inv = pl.reciprocal(l_full, approx=True)
        o_ref[0] = (acc_sc[...] * inv).astype(o_ref.dtype)


def _proj_res_ln_kernel(a_ref, w_ref, b_ref, res_ref, g_ref, be_ref, o_ref, *, eps):
    # fused: attention-output projection + bias + residual + LayerNorm (f32 stats)
    y = (jnp.dot(a_ref[...], w_ref[...], preferred_element_type=jnp.float32)
         + b_ref[...] + res_ref[...].astype(jnp.float32))
    mu = jnp.mean(y, axis=-1, keepdims=True)
    var = jnp.mean((y - mu) ** 2, axis=-1, keepdims=True)
    o_ref[...] = ((y - mu) * lax.rsqrt(var + eps) * g_ref[...] + be_ref[...]).astype(o_ref.dtype)


def _ffn_res_ln_kernel(x_ref, w1_ref, b1_ref, w2_ref, b2_ref, g_ref, be_ref, o_ref,
                       acc_ref, *, eps):
    # fused: Linear -> ReLU -> Linear + residual + LayerNorm; dff axis tiled on the grid
    f = pl.program_id(1)

    @pl.when(f == 0)
    def _():
        acc_ref[...] = jnp.zeros_like(acc_ref)

    h = jnp.dot(x_ref[...], w1_ref[...], preferred_element_type=jnp.float32) + b1_ref[...]
    h = jnp.maximum(h, 0.0)
    acc_ref[...] += jnp.dot(h.astype(jnp.bfloat16), w2_ref[...],
                            preferred_element_type=jnp.float32)

    @pl.when(f == pl.num_programs(1) - 1)
    def _():
        y = acc_ref[...] + b2_ref[...] + x_ref[...].astype(jnp.float32)
        mu = jnp.mean(y, axis=-1, keepdims=True)
        var = jnp.mean((y - mu) ** 2, axis=-1, keepdims=True)
        o_ref[...] = ((y - mu) * lax.rsqrt(var + eps) * g_ref[...] + be_ref[...]).astype(o_ref.dtype)


# ----------------------------- kernel wrappers -----------------------------

def embed_pe(emb2d, pe, d_model):
    # TODO(synk): emit bf16 + multi-sequence row tiles once the S-row blocks are 16-aligned.
    M, D = emb2d.shape
    S = pe.shape[0]
    return pl.pallas_call(
        partial(_embed_pe_kernel, scale=math.sqrt(d_model)),
        out_shape=jax.ShapeDtypeStruct((M, D), jnp.float32),
        grid_spec=pltpu.PrefetchScalarGridSpec(
            num_scalar_prefetch=0, grid=(M // S,),
            in_specs=[pl.BlockSpec((S, D), lambda b: (b, 0)),
                      pl.BlockSpec((S, D), lambda b: (0, 0))],
            out_specs=pl.BlockSpec((S, D), lambda b: (b, 0))),
        compiler_params=pltpu.CompilerParams(dimension_semantics=("parallel",)),
    )(emb2d, pe)


def linear(x2d, w, b):
    """x2d (M, K) bf16/f32, w (K, N) bf16, b (1, N) f32 -> (M, N) bf16."""
    M, K = x2d.shape
    N = w.shape[1]
    tm, tn, tk = _tile(M, 256), _tile(N, 256), _tile(K, 512)
    return pl.pallas_call(
        _matmul_bias_kernel,
        out_shape=jax.ShapeDtypeStruct((M, N), jnp.bfloat16),
        grid_spec=pltpu.PrefetchScalarGridSpec(
            num_scalar_prefetch=0,
            grid=(M // tm, N // tn, K // tk),
            in_specs=[pl.BlockSpec((tm, tk), lambda i, j, k: (i, k)),
                      pl.BlockSpec((tk, tn), lambda i, j, k: (k, j)),
                      pl.BlockSpec((1, tn), lambda i, j, k: (0, j))],
            out_specs=pl.BlockSpec((tm, tn), lambda i, j, k: (i, j)),
            scratch_shapes=[pltpu.VMEM((tm, tn), jnp.float32)]),
        compiler_params=pltpu.CompilerParams(
            dimension_semantics=("parallel", "parallel", "arbitrary"),
            vmem_limit_bytes=_VMEM_LIMIT),
    )(x2d, w, b)


def attention(q_arr, kv_arr, mask, *, num_heads, d_model, q_col, kv_col):
    """q_arr (B, Sq, Wq) bf16, kv_arr (B, Sk, Wkv) bf16, mask (Bm, Sq_m, Sk) f32.

    Heads are packed along the feature axis. q_col is the starting column of the Q slot
    inside q_arr; kv_col is the starting column of the K slot inside kv_arr (V at +d_model).
    When d_model is 128-aligned, only the needed Q / K|V column blocks are DMA'd.
    """
    B, Sq, Wq = q_arr.shape
    _, Sk, Wkv = kv_arr.shape
    Bm, Sq_m, _ = mask.shape
    head_dim = d_model // num_heads
    tq = _tile(Sq, 128)
    tk = _tile(Sk, 256)

    col_ok = (d_model % 128 == 0)
    if col_ok:
        qb = q_col // d_model
        kb = kv_col // (2 * d_model)
        q_spec = pl.BlockSpec((1, tq, d_model), lambda b, qi, kv, _qb=qb: (b, qi, _qb))
        kv_spec = pl.BlockSpec((1, tk, 2 * d_model), lambda b, qi, kv, _kb=kb: (b, kv, _kb))
        q_off, k_off, v_off = 0, 0, d_model
    else:
        q_spec = pl.BlockSpec((1, tq, Wq), lambda b, qi, kv: (b, qi, 0))
        kv_spec = pl.BlockSpec((1, tk, Wkv), lambda b, qi, kv: (b, kv, 0))
        q_off, k_off, v_off = q_col, kv_col, kv_col + d_model

    # mask batch/query broadcast handled via the index_map (never materialized in HBM)
    mq = tq if Sq_m > 1 else 1
    if Bm > 1 and Sq_m > 1:
        mask_idx = lambda b, qi, kv: (b, qi, kv)
    elif Bm > 1:
        mask_idx = lambda b, qi, kv: (b, 0, kv)
    elif Sq_m > 1:
        mask_idx = lambda b, qi, kv: (0, qi, kv)
    else:
        mask_idx = lambda b, qi, kv: (0, 0, kv)

    return pl.pallas_call(
        partial(_attn_kernel, num_heads=num_heads, head_dim=head_dim,
                scale=1.0 / math.sqrt(head_dim),
                q_off=q_off, k_off=k_off, v_off=v_off),
        out_shape=jax.ShapeDtypeStruct((B, Sq, d_model), jnp.bfloat16),
        grid_spec=pltpu.PrefetchScalarGridSpec(
            num_scalar_prefetch=0,
            grid=(B, Sq // tq, Sk // tk),              # KV axis innermost (init/finalize)
            in_specs=[q_spec, kv_spec, pl.BlockSpec((1, mq, tk), mask_idx)],
            out_specs=pl.BlockSpec((1, tq, d_model), lambda b, qi, kv: (b, qi, 0)),
            scratch_shapes=[pltpu.VMEM((num_heads, tq, 128), jnp.float32),   # m (lane-repl.)
                            pltpu.VMEM((num_heads, tq, 128), jnp.float32),   # l (lane-repl.)
                            pltpu.VMEM((tq, d_model), jnp.float32)]),        # acc
        compiler_params=pltpu.CompilerParams(
            dimension_semantics=("parallel", "parallel", "arbitrary"),
            vmem_limit_bytes=_VMEM_LIMIT),
    )(q_arr, kv_arr, mask)


def proj_res_ln(a2d, w, b, res2d, gamma, beta, eps=1e-5):
    M, D = res2d.shape
    tm = _tile(M, 256)
    return pl.pallas_call(
        partial(_proj_res_ln_kernel, eps=eps),
        out_shape=jax.ShapeDtypeStruct((M, D), jnp.bfloat16),
        grid_spec=pltpu.PrefetchScalarGridSpec(
            num_scalar_prefetch=0, grid=(M // tm,),
            in_specs=[pl.BlockSpec((tm, D), lambda i: (i, 0)),
                      pl.BlockSpec(w.shape, lambda i: (0, 0)),
                      pl.BlockSpec((1, D), lambda i: (0, 0)),
                      pl.BlockSpec((tm, D), lambda i: (i, 0)),
                      pl.BlockSpec((1, D), lambda i: (0, 0)),
                      pl.BlockSpec((1, D), lambda i: (0, 0))],
            out_specs=pl.BlockSpec((tm, D), lambda i: (i, 0))),
        compiler_params=pltpu.CompilerParams(
            dimension_semantics=("parallel",),
            vmem_limit_bytes=_VMEM_LIMIT),
    )(a2d, w, b, res2d, gamma, beta)


def ffn_res_ln(x2d, w1, b1, w2, b2, gamma, beta, eps=1e-5):
    M, D = x2d.shape
    dff = w1.shape[1]
    tm = _tile(M, 256)
    tf = _tile(dff, 512)
    return pl.pallas_call(
        partial(_ffn_res_ln_kernel, eps=eps),
        out_shape=jax.ShapeDtypeStruct((M, D), jnp.bfloat16),
        grid_spec=pltpu.PrefetchScalarGridSpec(
            num_scalar_prefetch=0, grid=(M // tm, dff // tf),
            in_specs=[pl.BlockSpec((tm, D), lambda i, f: (i, 0)),
                      pl.BlockSpec((D, tf), lambda i, f: (0, f)),
                      pl.BlockSpec((1, tf), lambda i, f: (0, f)),
                      pl.BlockSpec((tf, D), lambda i, f: (f, 0)),
                      pl.BlockSpec((1, D), lambda i, f: (0, 0)),
                      pl.BlockSpec((1, D), lambda i, f: (0, 0)),
                      pl.BlockSpec((1, D), lambda i, f: (0, 0))],
            out_specs=pl.BlockSpec((tm, D), lambda i, f: (i, 0)),
            scratch_shapes=[pltpu.VMEM((tm, D), jnp.float32)]),
        compiler_params=pltpu.CompilerParams(
            dimension_semantics=("parallel", "arbitrary"),
            vmem_limit_bytes=_VMEM_LIMIT),
    )(x2d, w1, b1, w2, b2, gamma, beta)


# ----------------------------- decoder forward -----------------------------

def decoder_block(x2d, enc2d, B, S, Se, la_mask, pad_mask, p, num_heads, d_model):
    D = d_model
    sa = p["self_attn"]
    # masked self-attention: one fused [K|V|Q] projection, flash attention, fused out-proj+LN
    kvq = linear(x2d, sa["w_kvq"], sa["b_kvq"]).reshape(B, S, 3 * D)
    a1 = attention(kvq, kvq, la_mask, num_heads=num_heads, d_model=D, q_col=2 * D, kv_col=0)
    x1 = proj_res_ln(a1.reshape(B * S, D), sa["w_o"], sa["b_o"], x2d, p["ln1_g"], p["ln1_b"])

    ca = p["cross_attn"]
    # encoder-decoder cross-attention: Q projection + fused [K|V] projection
    q = linear(x1, ca["w_q"], ca["b_q"]).reshape(B, S, D)
    kv = linear(enc2d, ca["w_kv"], ca["b_kv"]).reshape(B, Se, 2 * D)
    a2 = attention(q, kv, pad_mask, num_heads=num_heads, d_model=D, q_col=0, kv_col=0)
    x2 = proj_res_ln(a2.reshape(B * S, D), ca["w_o"], ca["b_o"], x1, p["ln2_g"], p["ln2_b"])

    # fused FFN (dff-tiled) + residual + LayerNorm
    x3 = ffn_res_ln(x2, p["ffn"]["w1"], p["ffn"]["b1"], p["ffn"]["w2"], p["ffn"]["b2"],
                    p["ln3_g"], p["ln3_b"])
    return x3


def decoder_forward(params, tokens, enc_output, look_ahead_mask, padding_mask,
                    *, num_heads, d_model):
    B, S = tokens.shape
    Se = enc_output.shape[1]

    # TODO(synk): embedding gather is data-dependent (jnp.take glue); scale+PE add is Pallas.
    emb = jnp.take(params["embedding"], tokens, axis=0).reshape(B * S, d_model)   # f32
    pe = params["pe"][:S]                                                          # (S, D) f32
    x2d = embed_pe(emb, pe, d_model)                                               # (B*S, D) f32
    # TODO(synk): dropout layers are identity here (eval-mode semantics).

    # drop the singleton heads axis; head/batch broadcast happens via BlockSpec index_maps
    la_mask = jnp.squeeze(look_ahead_mask.astype(jnp.float32), axis=1)    # (1, S, S)
    pad_mask = jnp.squeeze(padding_mask.astype(jnp.float32), axis=1)      # (B, 1, Se)

    enc2d = enc_output.reshape(B * Se, d_model).astype(jnp.bfloat16)
    for layer_p in params["layers"]:
        x2d = decoder_block(x2d, enc2d, B, S, Se, la_mask, pad_mask,
                            layer_p, num_heads, d_model)
    return x2d.reshape(B, S, d_model).astype(jnp.float32)


# ----------------------------- parameter init -----------------------------

def _dense_init(key, fan_in, fan_out):
    kw, kb = jax.random.split(key)
    bound = 1.0 / math.sqrt(fan_in)
    w = jax.random.uniform(kw, (fan_in, fan_out), jnp.float32, -bound, bound)
    b = jax.random.uniform(kb, (fan_out,), jnp.float32, -bound, bound)
    return w, b


def _mha_init(key, d_model):
    ks = jax.random.split(key, 4)
    wq, bq = _dense_init(ks[0], d_model, d_model)
    wk, bk = _dense_init(ks[1], d_model, d_model)
    wv, bv = _dense_init(ks[2], d_model, d_model)
    wo, bo = _dense_init(ks[3], d_model, d_model)
    return {
        # self-attn packing [K | V | Q]: K/V are the first 2*D columns (one column block),
        # Q is the last D columns (another column block) — attention DMAs only what it needs.
        "w_kvq": jnp.concatenate([wk, wv, wq], axis=1).astype(jnp.bfloat16),
        "b_kvq": jnp.concatenate([bk, bv, bq]).reshape(1, -1),
        # cross-attn packing: Q alone, [K | V]
        "w_q": wq.astype(jnp.bfloat16), "b_q": bq.reshape(1, -1),
        "w_kv": jnp.concatenate([wk, wv], axis=1).astype(jnp.bfloat16),
        "b_kv": jnp.concatenate([bk, bv]).reshape(1, -1),
        "w_o": wo.astype(jnp.bfloat16), "b_o": bo.reshape(1, -1),
    }


def _sinusoidal_pe(max_len, d_model):
    pos = jnp.arange(max_len, dtype=jnp.float32)[:, None]
    i = jnp.arange(0, d_model, 2, dtype=jnp.float32)
    div = jnp.exp(-i * (math.log(10000.0) / d_model))
    pe = jnp.zeros((max_len, d_model), jnp.float32)
    pe = pe.at[:, 0::2].set(jnp.sin(pos * div))
    pe = pe.at[:, 1::2].set(jnp.cos(pos * div))
    return pe


def init_decoder_params(key, vocab_size, d_model, num_heads, dff, num_layers, max_len):
    keys = jax.random.split(key, num_layers + 1)
    params = {
        "embedding": jax.random.normal(keys[0], (vocab_size, d_model), jnp.float32),
        "pe": _sinusoidal_pe(max_len, d_model),
        "layers": [],
    }
    for li in range(num_layers):
        ks = jax.random.split(keys[li + 1], 4)
        w1, b1 = _dense_init(ks[2], d_model, dff)
        w2, b2 = _dense_init(ks[3], dff, d_model)
        params["layers"].append({
            "self_attn": _mha_init(ks[0], d_model),
            "cross_attn": _mha_init(ks[1], d_model),
            "ffn": {"w1": w1.astype(jnp.bfloat16), "b1": b1.reshape(1, -1),
                    "w2": w2.astype(jnp.bfloat16), "b2": b2.reshape(1, -1)},
            "ln1_g": jnp.ones((1, d_model), jnp.float32),
            "ln1_b": jnp.zeros((1, d_model), jnp.float32),
            "ln2_g": jnp.ones((1, d_model), jnp.float32),
            "ln2_b": jnp.zeros((1, d_model), jnp.float32),
            "ln3_g": jnp.ones((1, d_model), jnp.float32),
            "ln3_b": jnp.zeros((1, d_model), jnp.float32),
        })
    return params


# ----------------------------- main -----------------------------

if __name__ == "__main__":
    vocab_size, d_model, num_heads, dff, num_layers, max_len = 50, 32, 4, 64, 2, 16
    B, S_dec, S_enc = 2, 8, 8

    key = jax.random.PRNGKey(0)
    k_par, k_tok, k_enc = jax.random.split(key, 3)

    params = init_decoder_params(k_par, vocab_size, d_model, num_heads, dff, num_layers, max_len)

    tokens = jax.random.randint(k_tok, (B, S_dec), 0, vocab_size, dtype=jnp.int32)
    enc_output = jax.random.normal(k_enc, (B, S_enc, d_model), jnp.float32)
    look_ahead_mask = jnp.tril(jnp.ones((S_dec, S_dec), jnp.float32))[None, None]   # (1,1,S,S)
    padding_mask = jnp.ones((B, 1, 1, S_enc), jnp.float32)                          # (B,1,1,Se)

    out = decoder_forward(params, tokens, enc_output, look_ahead_mask, padding_mask,
                          num_heads=num_heads, d_model=d_model)
    out = jax.block_until_ready(out)
    assert out.shape == (B, S_dec, d_model)
    assert bool(jnp.all(jnp.isfinite(out)))
    print("KERNEL_OK")
</pallas_src>

<mosaic_0001>
module attributes {stable_mosaic.version = 11 : i64} {
  func.func @_embed_pe_kernel(%arg0: i32, %arg1: memref<8x32xf32, #tpu.memory_space<vmem>>, %arg2: memref<8x32xf32, #tpu.memory_space<vmem>>, %arg3: memref<8x32xf32, #tpu.memory_space<vmem>>) attributes {dimension_semantics = [#tpu.dimension_semantics<parallel>], iteration_bounds = array<i64: 2>, scalar_prefetch = 0 : i64, scratch_operands = 0 : i64, tpu.core_type = #tpu.core_type<tc>, window_params = [{transform_indices = @transform_0, window_bounds = array<i64: 8, 32>}, {pipeline_mode = #tpu.pipeline_mode<synchronous>, transform_indices = @transform_1, window_bounds = array<i64: 8, 32>}, {transform_indices = @transform_2, window_bounds = array<i64: 8, 32>}]} {
    %c0 = arith.constant 0 : index
    %c0_0 = arith.constant 0 : index
    %0 = vector.load %arg1[%c0, %c0_0] : memref<8x32xf32, #tpu.memory_space<vmem>>, vector<8x32xf32>
    %cst = arith.constant 5.65685415 : f32
    %1 = vector.broadcast %cst : f32 to vector<8x32xf32>
    %2 = arith.mulf %0, %1 : vector<8x32xf32>
    %c0_1 = arith.constant 0 : index
    %c0_2 = arith.constant 0 : index
    %3 = vector.load %arg2[%c0_1, %c0_2] : memref<8x32xf32, #tpu.memory_space<vmem>>, vector<8x32xf32>
    %4 = arith.addf %2, %3 : vector<8x32xf32>
    %c0_3 = arith.constant 0 : index
    %c0_4 = arith.constant 0 : index
    %5 = vector.load %arg3[%c0_3, %c0_4] : memref<8x32xf32, #tpu.memory_space<vmem>>, vector<8x32xf32>
    tpu.vector_store %arg3[%c0_3, %c0_4], %4 {strides = array<i32>} : memref<8x32xf32, #tpu.memory_space<vmem>>, vector<8x32xf32>,
    return
  }
  func.func @transform_0(%arg0: i32) -> (i32, i32) {
    %c0_i32 = arith.constant 0 : i32
    %c0_i32_0 = arith.constant 0 : i32
    return %arg0, %c0_i32 : i32, i32
  }
  func.func @transform_1(%arg0: i32) -> (i32, i32) {
    %c0_i32 = arith.constant 0 : i32
    %c0_i32_0 = arith.constant 0 : i32
    %c0_i32_1 = arith.constant 0 : i32
    return %c0_i32, %c0_i32_0 : i32, i32
  }
  func.func @transform_2(%arg0: i32) -> (i32, i32) {
    %c0_i32 = arith.constant 0 : i32
    %c0_i32_0 = arith.constant 0 : i32
    return %arg0, %c0_i32 : i32, i32
  }
}

</mosaic_0001>

<llo_original>
// kernel: tpu_custom_call.1
$region0: #{tpu_custom_call.1}
  #allocation0 [shape = 'u32[]', space=smem, size = 0x4, offset = 0x4, fixed_abs, tag = 'smem constant byte address 0x4 - core index']
  #allocation1 [shape = 'u32[144,128]{1,0:T(1,128)}', space=vmem, size = 0x12000, scoped, tag = 'internal scratch']
  %s0 = inlined_call_operand.hbm [shape: f32[16,32], index: 0, kind: input, shape index: {}]
  %s1 = inlined_call_operand.hbm [shape: f32[8,32], index: 1, kind: input, shape index: {}]
  %s2 = inlined_call_operand.hbm [shape: f32[16,32], index: 2, kind: output, shape index: {}]
  %s3 = sld [smem:[#allocation0]]
  $region49: #{tpu_custom_call.1} parent=0
    _
  %s5 = ssub.s32 1, %s3
  %s6 = scalar_select 0, %s5, %s3
  $region1: #{tpu_custom_call.1} parent=0
    #allocation2 [shape = 'u8[8192]{0}', space=vmem, size = 0x2000, scoped, tag = 'input window, operand 0']
    #allocation3 [shape = 's32[2]{0}', space=sflag, size = 0x8, scoped, tag = 'scoped memory for tpu_custom_call.1']
    #allocation4 [shape = 's32[2]{0}', space=sflag, size = 0x8, scoped, tag = 'scoped memory for tpu_custom_call.1']
    #allocation5 [shape = 'u8[4096]{0}', space=vmem, size = 0x1000, scoped, tag = 'input window, operand 1, single buffered']
    #allocation6 [shape = 's32[1]{0}', space=sflag, size = 0x4, scoped, tag = 'scoped memory for tpu_custom_call.1']
    #allocation7 [shape = 'u8[8192]{0}', space=vmem, size = 0x2000, scoped, tag = 'output window, operand 0']
    %7 = vsyncpa [#allocation3], 0
    %s8 = scalar_lea.sflag [#allocation3], 1
    %9 = vsyncpa %s8, 0
    %10 = vsyncpa [#allocation6], 0
    %11 = vsyncpa [#allocation4], 0
    %s12 = scalar_lea.sflag [#allocation4], 1
    %13 = vsyncpa %s12, 0
    loop: start=0, step=1, limit=4
    $region2: #{tpu_custom_call.1} parent=1 // loop_pre_header
      _
    $region3: #{tpu_custom_call.1} parent=1 // loop_header
      %s15 = sphi 0, %s19
      %p16 = scmp.ge.s32.totalorder %s15, 4
      %s25 = sphi 0, %s27
      %s28 = sphi 0, %s25
      %s29 = sphi 0, %s28
      %s45 = sphi 0, %s29
      %s49 = sphi 0, %s49
      %s51 = sphi 0, %s49
      %s52 = sphi 0, %s51
      %s66 = sphi 0, %s52
      %s72 = sphi 0, %s74
      %s75 = sphi 0, %s72
      %s76 = sphi 0, %s75
      %s92 = sphi 0, %s76
    $region4: #{tpu_custom_call.1} parent=1 // loop_header_branch
      %18 = sbr.rel (%p16) target = $region8
    $region5: #{tpu_custom_call.1} parent=1 // loop_body
      %s20 = ssub.s32 %s15, 1
      %s21 = ssub.s32 %s15, 2
      %s22 = sadd.s32 %s15, 1
      %s23 = ssub.s32 %s15, %s22
      %p24 = scmp.eq.s32.totalorder %s23, 0
      %s26 = sadd.s32 %s25, 1
      %s27 = scalar_select %p24, %s25, %s26
      %p30 = pneg %p24
      %p31 = scmp.eq.s32.totalorder %s15, 1
      %p32 = por %p30, %p31
      %p33 = scmp.ne.s32.totalorder %s25, %s28
      %p34 = scmp.eq.s32.totalorder %s15, 0
      %p35 = por %p33, %p34
      %p36 = scmp.ne.s32.totalorder %s25, %s28
      %p37 = scmp.eq.s32.totalorder %s20, 1
      %p38 = por %p36, %p37
      %p39 = scmp.ne.s32.totalorder %s28, %s29
      %p40 = scmp.eq.s32.totalorder %s20, 0
      %p41 = por %p39, %p40
      %p42 = scmp.ne.s32.totalorder %s28, %s29
      %p43 = scmp.eq.s32.totalorder %s21, 1
      %p44 = por %p42, %p43
      %p46 = scmp.ne.s32.totalorder %s29, %s45
      %p47 = scmp.eq.s32.totalorder %s21, 0
      %p48 = por %p46, %p47
      %s50 = sadd.s32 %s49, 1
      %p53 = scmp.eq.s32.totalorder %s15, 1
      %p54 = scmp.ne.s32.totalorder %s49, %s51
      %p55 = scmp.eq.s32.totalorder %s15, 0
      %p56 = por %p54, %p55
      %p57 = scmp.ne.s32.totalorder %s49, %s51
      %p58 = scmp.eq.s32.totalorder %s20, 1
      %p59 = por %p57, %p58
      %p60 = scmp.ne.s32.totalorder %s51, %s52
      %p61 = scmp.eq.s32.totalorder %s20, 0
      %p62 = por %p60, %p61
      %p63 = scmp.ne.s32.totalorder %s51, %s52
      %p64 = scmp.eq.s32.totalorder %s21, 1
      %p65 = por %p63, %p64
      %p67 = scmp.ne.s32.totalorder %s52, %s66
      %p68 = scmp.eq.s32.totalorder %s21, 0
      %p69 = por %p67, %p68
      %s70 = ssub.s32 %s15, %s22
      %p71 = scmp.eq.s32.totalorder %s70, 0
      %s73 = sadd.s32 %s72, 1
      %s74 = scalar_select %p71, %s72, %s73
      %p77 = pneg %p71
      %p78 = scmp.eq.s32.totalorder %s15, 1
      %p79 = por %p77, %p78
      %p80 = scmp.ne.s32.totalorder %s72, %s75
      %p81 = scmp.eq.s32.totalorder %s15, 0
      %p82 = por %p80, %p81
      %p83 = scmp.ne.s32.totalorder %s72, %s75
      %p84 = scmp.eq.s32.totalorder %s20, 1
      %p85 = por %p83, %p84
      %p86 = scmp.ne.s32.totalorder %s75, %s76
      %p87 = scmp.eq.s32.totalorder %s20, 0
      %p88 = por %p86, %p87
      %p89 = scmp.ne.s32.totalorder %s75, %s76
      %p90 = scmp.eq.s32.totalorder %s21, 1
      %p91 = por %p89, %p90
      %p93 = scmp.ne.s32.totalorder %s76, %s92
      %p94 = scmp.eq.s32.totalorder %s21, 0
      %p95 = por %p93, %p94
      %p96 = scmp.le.s32.totalorder 1, %s15
      %p97 = scmp.lt.s32.totalorder %s15, 3
      %p98 = pnand %p96, %p97
      %p99 = pneg %p98
      // Predicated region
      $region9: #{tpu_custom_call.1} parent=5 // pred_check
        _
      $region10: #{tpu_custom_call.1} parent=5 // pred_check_branch
        %101 = sbr.rel (%p98) target = $region12
      $region11: #{tpu_custom_call.1} parent=5 // pred_region
        %s102 = ssub.s32 %s15, 1
        // Predicated region
        $region13: #{tpu_custom_call.1} parent=11 // pred_check
          %p103 = pneg %p62
        $region14: #{tpu_custom_call.1} parent=11 // pred_check_branch
          %105 = sbr.rel (%p103) target = $region16
        $region15: #{tpu_custom_call.1} parent=11 // pred_region
          %s107 = ssub.s32 128, 128
          %108 = vsyncadd [#allocation6], %s107
          %s110 = sshll.u32 [#allocation5], 4
          %s111 = int_to_ptr.vmem [resolvable:$true] %s110
          %113 = dma.hbm_to_vmem [thread:$0]  %s1, 128, %s111, [#allocation6]
        $region16: #{tpu_custom_call.1} parent=11 // pred_fallthru
          _
      $region12: #{tpu_custom_call.1} parent=5 // pred_fallthru
        _
      %p114 = scmp.lt.s32.totalorder %s15, 2
      // Predicated region
      $region17: #{tpu_custom_call.1} parent=5 // pred_check
        %p115 = pneg %p114
      $region18: #{tpu_custom_call.1} parent=5 // pred_check_branch
        %117 = sbr.rel (%p115) target = $region20
      $region19: #{tpu_custom_call.1} parent=5 // pred_region
        // Predicated region
        $region21: #{tpu_custom_call.1} parent=19 // pred_check
          %p118 = pneg %p35
        $region22: #{tpu_custom_call.1} parent=19 // pred_check_branch
          %120 = sbr.rel (%p118) target = $region24
        $region23: #{tpu_custom_call.1} parent=19 // pred_region
          %s121 = sand.u32 %s25, 1
          %s122 = scalar_lea.sflag [#allocation3], %s121
          %s123 = sand.u32 %s25, 1
          %s124 = smul.addr %s123, 8
          %s125 = scalar_lea.vmem [#allocation2], %s124
          %s127 = ssub.s32 128, 128
          %128 = vsyncadd %s122, %s127
          %s129 = smul.addr %s15, 128
          %s130 = scalar_lea.hbm %s0, %s129
          %s132 = sshll.u32 %s125, 4
          %s133 = int_to_ptr.vmem [resolvable:$true] %s132
          %135 = dma.hbm_to_vmem [thread:$0]  %s130, 128, %s133, %s122
        $region24: #{tpu_custom_call.1} parent=19 // pred_fallthru
          _
      $region20: #{tpu_custom_call.1} parent=5 // pred_fallthru
        _
      %p136 = scmp.le.s32.totalorder 1, %s15
      %p137 = scmp.lt.s32.totalorder %s15, 3
      %p138 = pnand %p136, %p137
      %p139 = pneg %p138
      // Predicated region
      $region25: #{tpu_custom_call.1} parent=5 // pred_check
        _
      $region26: #{tpu_custom_call.1} parent=5 // pred_check_branch
        %141 = sbr.rel (%p138) target = $region28
      $region27: #{tpu_custom_call.1} parent=5 // pred_region
        %s142 = ssub.s32 %s15, 1
        %s143 = sand.u32 %s28, 1
        %s144 = scalar_lea.sflag [#allocation3], %s143
        %s145 = sand.u32 %s28, 1
        %s146 = smul.addr %s145, 8
        %s147 = scalar_lea.vmem [#allocation2], %s146
        // Predicated region
        $region29: #{tpu_custom_call.1} parent=27 // pred_check
          %p148 = pneg %p41
        $region30: #{tpu_custom_call.1} parent=27 // pred_check_branch
          %150 = sbr.rel (%p148) target = $region32
        $region31: #{tpu_custom_call.1} parent=27 // pred_region
          %151 = dma.done %s144, 128
        $region32: #{tpu_custom_call.1} parent=27 // pred_fallthru
          _
        // Predicated region
        $region33: #{tpu_custom_call.1} parent=27 // pred_check
          %p152 = pneg %p62
        $region34: #{tpu_custom_call.1} parent=27 // pred_check_branch
          %154 = sbr.rel (%p152) target = $region36
        $region35: #{tpu_custom_call.1} parent=27 // pred_region
          %155 = dma.done [#allocation6], 128
        $region36: #{tpu_custom_call.1} parent=27 // pred_fallthru
          _
        %s156 = sand.u32 %s28, 1
        %s157 = scalar_lea.sflag [#allocation3], %s156
        %s158 = sand.u32 %s28, 1
        %s159 = smul.addr %s158, 8
        %s160 = scalar_lea.vmem [#allocation2], %s159
        %p161 = pneg %p41
        %p162 = pneg %p38
        %p163 = pneg %p62
        %p164 = pneg %p59
        %p165 = pneg %p88
        %p166 = pneg %p85
        %s167 = sand.u32 %s75, 1
        %s168 = scalar_lea.sflag [#allocation4], %s167
        %s169 = sand.u32 %s75, 1
        %s170 = smul.addr %s169, 8
        %s171 = scalar_lea.vmem [#allocation7], %s170
        %v172 = vld [vmem:[%s147] sm:$0xff]
        %v173 = vmul.f32 %v172, 5.656854
        %v174 = vld [vmem:[#allocation5] sm:$0xff]
        %v175 = vadd.f32 %v173, %v174
        %vm176 = vcmask 261120
        %177 = vst.msk [vmem:[%s171] sm:$0xff] %vm176, %v175
        %s178 = sand.u32 %s75, 1
        %s179 = scalar_lea.sflag [#allocation4], %s178
        %s180 = sand.u32 %s75, 1
        %s181 = smul.addr %s180, 8
        %s182 = scalar_lea.vmem [#allocation7], %s181
        // Predicated region
        $region37: #{tpu_custom_call.1} parent=27 // pred_check
          %p183 = pneg %p85
        $region38: #{tpu_custom_call.1} parent=27 // pred_check_branch
          %185 = sbr.rel (%p183) target = $region40
        $region39: #{tpu_custom_call.1} parent=27 // pred_region
          %s187 = ssub.s32 128, 128
          %188 = vsyncadd %s179, %s187
          %s189 = smul.addr %s20, 128
          %s190 = scalar_lea.hbm %s2, %s189
          %s192 = sshll.u32 %s182, 4
          %s193 = int_to_ptr.vmem [resolvable:$true] %s192
          %195 = dma.vmem_to_hbm [thread:$0]  %s193, 128, %s190, %s179
        $region40: #{tpu_custom_call.1} parent=27 // pred_fallthru
          _
      $region28: #{tpu_custom_call.1} parent=5 // pred_fallthru
        _
      %p196 = scmp.le.s32.totalorder 2, %s15
      // Predicated region
      $region41: #{tpu_custom_call.1} parent=5 // pred_check
        %p197 = pneg %p196
      $region42: #{tpu_custom_call.1} parent=5 // pred_check_branch
        %199 = sbr.rel (%p197) target = $region44
      $region43: #{tpu_custom_call.1} parent=5 // pred_region
        %s200 = ssub.s32 %s15, 2
        // Predicated region
        $region45: #{tpu_custom_call.1} parent=43 // pred_check
          %p201 = pneg %p91
        $region46: #{tpu_custom_call.1} parent=43 // pred_check_branch
          %203 = sbr.rel (%p201) target = $region48
        $region47: #{tpu_custom_call.1} parent=43 // pred_region
          %s204 = sand.u32 %s76, 1
          %s205 = scalar_lea.sflag [#allocation4], %s204
          %s206 = sand.u32 %s76, 1
          %s207 = smul.addr %s206, 8
          %s208 = scalar_lea.vmem [#allocation7], %s207
          %209 = dma.done %s205, 128
        $region48: #{tpu_custom_call.1} parent=43 // pred_fallthru
          _
      $region44: #{tpu_custom_call.1} parent=5 // pred_fallthru
        _
    $region6: #{tpu_custom_call.1} parent=1 // loop_footer
      %s19 = sadd.s32 1, %s15
    $region7: #{tpu_custom_call.1} parent=1 // loop_footer_branch
      %14 = sbr.rel target = $region3
    $region8: #{tpu_custom_call.1} parent=1 // loop_exit
      _
    %210 = vsyncpa [#allocation3], 1
    %s211 = scalar_lea.sflag [#allocation3], 1
    %212 = vsyncpa %s211, 1
    %213 = vsyncpa [#allocation6], 1
    %214 = vsyncpa [#allocation4], 1
    %s215 = scalar_lea.sflag [#allocation4], 1
    %216 = vsyncpa %s215, 1

</llo_original>
